<compile_context>
chip_gen: v7x
topology: tpu7x:2x2x1
jax: 0.10.0
libtpu: 0.0.40
codegen_flags: <defaults>
</compile_context>

<pallas_src>
import functools
import math

import jax
import jax.numpy as jnp
from jax import lax
from jax.experimental import pallas as pl
from jax.experimental.pallas import tpu as pltpu


# -----------------------------------------------------------------------------
# Pallas kernel: one ResBlock on a (C, L) tile (one batch element per grid step)
# -----------------------------------------------------------------------------
def _resblock_kernel(x_ref, w1_ref, b1_ref, w2s_ref, b2s_ref, o_ref, *, dil):
    # x_ref  : (C, L)  f32, raw input (length on lanes)
    # w1_ref : (C, 3C) bf16  -- the 3 dilated-conv taps concatenated on Cin
    # w2s_ref: (C, 2C) bf16  -- [conv2 | conv_skip] concatenated on Cin
    # b1_ref : (C, 1)  f32 ; b2s_ref: (C, 1) f32 (= b2 + b_skip)
    C, L = x_ref.shape
    mm = w1_ref.dtype  # MXU input dtype (bf16)

    def act(v):  # LeakyReLU(0.2), f32 on the VPU
        return jnp.where(v >= 0.0, v, 0.2 * v)

    x = x_ref[...]                 # raw input (skip path), f32
    a = act(x)                     # activated input (main path), f32

    # Cast once; all tap-window construction happens at bf16 byte volume.
    a_bf = a.astype(mm)
    x_bf = x.astype(mm)

    # ReplicationPad1d(dil) folded into the tap windows (edge replicate):
    #   left[l]  = a[l - dil]  (clamped to a[0])
    #   right[l] = a[l + dil]  (clamped to a[L-1])
    left = jnp.concatenate(
        [jnp.broadcast_to(a_bf[:, :1], (C, dil)), a_bf[:, :L - dil]], axis=1)
    right = jnp.concatenate(
        [a_bf[:, dil:], jnp.broadcast_to(a_bf[:, L - 1:], (C, dil))], axis=1)

    # Merge the 3 dilated taps on the contraction axis: one K=3C MXU matmul.
    a3 = jnp.concatenate([left, a_bf, right], axis=0)          # (3C, L) bf16

    h = jnp.dot(w1_ref[...], a3,
                preferred_element_type=jnp.float32) + b1_ref[...]
    h = act(h)

    # conv2 and conv_skip fused into one K=2C matmul; biases pre-summed.
    h2in = jnp.concatenate([h.astype(mm), x_bf], axis=0)       # (2C, L) bf16
    y = jnp.dot(w2s_ref[...], h2in,
                preferred_element_type=jnp.float32) + b2s_ref[...]

    o_ref[...] = y.astype(o_ref.dtype)


def resblock_pallas(x_ncl, kparams, dilation, padding):
    """ResBlock forward. x_ncl: (N, C, L) PyTorch layout, float32."""
    N, C, L = x_ncl.shape
    # The residual add only type-checks when the block is length-preserving.
    assert padding == dilation, "ResBlock requires padding == dilation"
    assert 0 < dilation < L

    w1, b1, w2s, b2s = kparams
    kernel = functools.partial(_resblock_kernel, dil=dilation)
    const2 = lambda n: (0, 0)   # weights/biases: resident, DMA'd once

    return pl.pallas_call(
        kernel,
        out_shape=jax.ShapeDtypeStruct((N, C, L), x_ncl.dtype),
        grid=(N,),
        in_specs=[
            pl.BlockSpec((None, C, L), lambda n: (n, 0, 0)),   # x: 1 batch / step
            pl.BlockSpec((C, 3 * C), const2),                  # conv1 (merged taps)
            pl.BlockSpec((C, 1), const2),                      # b1
            pl.BlockSpec((C, 2 * C), const2),                  # [conv2 | conv_skip]
            pl.BlockSpec((C, 1), const2),                      # b2 + b_skip
        ],
        out_specs=pl.BlockSpec((None, C, L), lambda n: (n, 0, 0)),
        compiler_params=pltpu.CompilerParams(
            dimension_semantics=("parallel",)),                # both TCs on v7x
    )(x_ncl, w1, b1, w2s, b2s)


# -----------------------------------------------------------------------------
# Deterministic synthetic parameters (weight_norm folded into effective weight)
# -----------------------------------------------------------------------------
def _weight_norm(v, g):
    # torch weight_norm default dim=0: norm over (in, k) per output channel.
    norm = jnp.sqrt(jnp.sum(v * v, axis=(1, 2), keepdims=True))
    return g[:, None, None] * v / norm


def make_resblock_params(key, C):
    ks = jax.random.split(key, 9)
    s3 = 1.0 / math.sqrt(C * 3)
    s1 = 1.0 / math.sqrt(C)
    v1 = jax.random.normal(ks[0], (C, C, 3), jnp.float32) * s3
    g1 = 1.0 + 0.05 * jax.random.normal(ks[1], (C,), jnp.float32)
    b1 = 0.1 * jax.random.normal(ks[2], (C,), jnp.float32)
    v2 = jax.random.normal(ks[3], (C, C, 1), jnp.float32) * s1
    g2 = 1.0 + 0.05 * jax.random.normal(ks[4], (C,), jnp.float32)
    b2 = 0.1 * jax.random.normal(ks[5], (C,), jnp.float32)
    vs = jax.random.normal(ks[6], (C, C, 1), jnp.float32) * s1
    gs = 1.0 + 0.05 * jax.random.normal(ks[7], (C,), jnp.float32)
    bs = 0.1 * jax.random.normal(ks[8], (C,), jnp.float32)
    return dict(w1=_weight_norm(v1, g1), b1=b1,
                w2=_weight_norm(v2, g2), b2=b2,
                ws=_weight_norm(vs, gs), bs=bs)


def to_kernel_layout(p, C, mxu_dtype=jnp.bfloat16):
    # torch Conv1d weight is (Cout, Cin, K). The kernel computes y = W @ x with
    # channels on the sublane axis, so each tap is used as-is (Cout, Cin).
    # conv1: the three dilated taps concatenated on the contraction axis,
    # matching the in-kernel [left ; a ; right] stacking.
    w1 = jnp.concatenate([p['w1'][:, :, k] for k in range(3)], axis=1)  # (C, 3C)
    # conv2 and conv_skip fused on the contraction axis; biases pre-summed.
    w2s = jnp.concatenate([p['w2'][:, :, 0], p['ws'][:, :, 0]], axis=1)  # (C, 2C)
    b2s = p['b2'] + p['bs']
    return (w1.astype(mxu_dtype), p['b1'].reshape(C, 1).astype(jnp.float32),
            w2s.astype(mxu_dtype), b2s.reshape(C, 1).astype(jnp.float32))


# -----------------------------------------------------------------------------
# Pure-JAX (XLA conv) reference for correctness checking
# -----------------------------------------------------------------------------
def resblock_ref(x_ncl, p, dilation, padding, matmul_dtype=jnp.float32):
    act = lambda v: jnp.where(v >= 0.0, v, 0.2 * v)

    def conv(x, w, b, dil=1):
        y = lax.conv_general_dilated(
            x.astype(matmul_dtype), w.astype(matmul_dtype),
            window_strides=(1,), padding='VALID', rhs_dilation=(dil,),
            dimension_numbers=('NCH', 'OIH', 'NCH'),
            preferred_element_type=jnp.float32)
        return y + b[None, :, None]

    res = x_ncl
    h = act(x_ncl)
    h = jnp.concatenate(
        [jnp.repeat(h[:, :, :1], padding, axis=2), h,
         jnp.repeat(h[:, :, -1:], padding, axis=2)], axis=2)
    h = conv(h, p['w1'], p['b1'], dilation)
    h = act(h)
    h = conv(h, p['w2'], p['b2'])
    res = conv(res, p['ws'], p['bs'])
    return h + res


# -----------------------------------------------------------------------------
if __name__ == "__main__":
    N, C, L = 2, 16, 128        # small shapes; L multiple of 128 -> lane-dense
    DILATION = 3
    PADDING = 3

    root = jax.random.PRNGKey(0)
    kx, kp = jax.random.split(root)
    x = jax.random.normal(kx, (N, C, L), jnp.float32)   # PyTorch NCL layout

    torch_params = make_resblock_params(kp, C)
    kernel_params = to_kernel_layout(torch_params, C, mxu_dtype=jnp.bfloat16)

    out = jax.block_until_ready(resblock_pallas(x, kernel_params, DILATION, PADDING))
    assert out.shape == (N, C, L) and out.dtype == jnp.float32

    # 1) Tight check vs a reference that emulates the kernel's bf16 MXU inputs
    #    with f32 accumulation (validates kernel math / layout / padding / fusion).
    ref_bf16 = jax.block_until_ready(
        resblock_ref(x, torch_params, DILATION, PADDING, matmul_dtype=jnp.bfloat16))
    err_exact = float(jnp.max(jnp.abs(out - ref_bf16)))
    assert err_exact < 1e-2, f"kernel vs bf16-emulating reference: {err_exact}"

    # 2) Looser check vs the full-f32 reference (bounds bf16 rounding error).
    ref_f32 = jax.block_until_ready(
        resblock_ref(x, torch_params, DILATION, PADDING, matmul_dtype=jnp.float32))
    err_full = float(jnp.max(jnp.abs(out - ref_f32)))
    assert err_full < 1e-1, f"kernel vs f32 reference: {err_full}"

    print("KERNEL_OK")
</pallas_src>

<mosaic_0001>
module attributes {stable_mosaic.version = 11 : i64} {
  func.func @_resblock_kernel(%arg0: i32, %arg1: memref<1x16x128xf32, #tpu.memory_space<vmem>>, %arg2: memref<16x48xbf16, #tpu.memory_space<vmem>>, %arg3: memref<16x1xf32, #tpu.memory_space<vmem>>, %arg4: memref<16x32xbf16, #tpu.memory_space<vmem>>, %arg5: memref<16x1xf32, #tpu.memory_space<vmem>>, %arg6: memref<1x16x128xf32, #tpu.memory_space<vmem>>) attributes {dimension_semantics = [#tpu.dimension_semantics<parallel>], iteration_bounds = array<i64: 2>, scalar_prefetch = 0 : i64, scratch_operands = 0 : i64, tpu.core_type = #tpu.core_type<tc>, window_params = [{transform_indices = @transform_0, window_bounds = array<i64: 1, 16, 128>}, {pipeline_mode = #tpu.pipeline_mode<synchronous>, transform_indices = @transform_1, window_bounds = array<i64: 16, 48>}, {pipeline_mode = #tpu.pipeline_mode<synchronous>, transform_indices = @transform_2, window_bounds = array<i64: 16, 1>}, {pipeline_mode = #tpu.pipeline_mode<synchronous>, transform_indices = @transform_3, window_bounds = array<i64: 16, 32>}, {pipeline_mode = #tpu.pipeline_mode<synchronous>, transform_indices = @transform_4, window_bounds = array<i64: 16, 1>}, {transform_indices = @transform_5, window_bounds = array<i64: 1, 16, 128>}]} {
    %c0 = arith.constant 0 : index
    %c0_0 = arith.constant 0 : index
    %c0_1 = arith.constant 0 : index
    %0 = vector.load %arg1[%c0, %c0_0, %c0_1] : memref<1x16x128xf32, #tpu.memory_space<vmem>>, vector<1x16x128xf32>
    %1 = vector.shape_cast %0 : vector<1x16x128xf32> to vector<16x128xf32>
    %cst = arith.constant 0.000000e+00 : f32
    %2 = vector.broadcast %cst : f32 to vector<16x128xf32>
    %3 = arith.cmpf oge, %1, %2 : vector<16x128xf32>
    %cst_2 = arith.constant 2.000000e-01 : f32
    %4 = vector.broadcast %cst_2 : f32 to vector<16x128xf32>
    %5 = arith.mulf %4, %1 : vector<16x128xf32>
    %6 = arith.select %3, %1, %5 : vector<16x128xi1>, vector<16x128xf32>
    %7 = arith.truncf %6 : vector<16x128xf32> to vector<16x128xbf16>
    %8 = arith.truncf %1 : vector<16x128xf32> to vector<16x128xbf16>
    %9 = vector.extract_strided_slice %7 {offsets = [0, 0], sizes = [16, 1], strides = [1, 1]} : vector<16x128xbf16> to vector<16x1xbf16>
    %10 = vector.shape_cast %9 : vector<16x1xbf16> to vector<16x1xbf16>
    %11 = vector.broadcast %10 : vector<16x1xbf16> to vector<16x3xbf16>
    %12 = vector.extract_strided_slice %7 {offsets = [0, 0], sizes = [16, 125], strides = [1, 1]} : vector<16x128xbf16> to vector<16x125xbf16>
    %13 = tpu.concatenate %11, %12 in 1 : vector<16x3xbf16>, vector<16x125xbf16> -> vector<16x128xbf16>
    %14 = vector.extract_strided_slice %7 {offsets = [0, 3], sizes = [16, 125], strides = [1, 1]} : vector<16x128xbf16> to vector<16x125xbf16>
    %15 = vector.extract_strided_slice %7 {offsets = [0, 127], sizes = [16, 1], strides = [1, 1]} : vector<16x128xbf16> to vector<16x1xbf16>
    %16 = vector.shape_cast %15 : vector<16x1xbf16> to vector<16x1xbf16>
    %17 = vector.broadcast %16 : vector<16x1xbf16> to vector<16x3xbf16>
    %18 = tpu.concatenate %14, %17 in 1 : vector<16x125xbf16>, vector<16x3xbf16> -> vector<16x128xbf16>
    %19 = tpu.concatenate %13, %7, %18 in 0 : vector<16x128xbf16>, vector<16x128xbf16>, vector<16x128xbf16> -> vector<48x128xbf16>
    %c0_3 = arith.constant 0 : index
    %c0_4 = arith.constant 0 : index
    %20 = vector.load %arg2[%c0_3, %c0_4] : memref<16x48xbf16, #tpu.memory_space<vmem>>, vector<16x48xbf16>
    %cst_5 = arith.constant dense<0.000000e+00> : vector<16x128xf32>
    %21 = tpu.matmul %20, %19, %cst_5 {dimension_numbers = #tpu.dot_dimension_numbers<[1], [0], [0], [1], [0, 0, 1, 1], [], []>} : vector<16x48xbf16>, vector<48x128xbf16>, vector<16x128xf32> -> vector<16x128xf32>
    %c0_6 = arith.constant 0 : index
    %c0_7 = arith.constant 0 : index
    %22 = vector.load %arg3[%c0_6, %c0_7] : memref<16x1xf32, #tpu.memory_space<vmem>>, vector<16x1xf32>
    %23 = vector.broadcast %22 : vector<16x1xf32> to vector<16x128xf32>
    %24 = arith.addf %21, %23 : vector<16x128xf32>
    %cst_8 = arith.constant 0.000000e+00 : f32
    %25 = vector.broadcast %cst_8 : f32 to vector<16x128xf32>
    %26 = arith.cmpf oge, %24, %25 : vector<16x128xf32>
    %cst_9 = arith.constant 2.000000e-01 : f32
    %27 = vector.broadcast %cst_9 : f32 to vector<16x128xf32>
    %28 = arith.mulf %27, %24 : vector<16x128xf32>
    %29 = arith.select %26, %24, %28 : vector<16x128xi1>, vector<16x128xf32>
    %30 = arith.truncf %29 : vector<16x128xf32> to vector<16x128xbf16>
    %31 = tpu.concatenate %30, %8 in 0 : vector<16x128xbf16>, vector<16x128xbf16> -> vector<32x128xbf16>
    %c0_10 = arith.constant 0 : index
    %c0_11 = arith.constant 0 : index
    %32 = vector.load %arg4[%c0_10, %c0_11] : memref<16x32xbf16, #tpu.memory_space<vmem>>, vector<16x32xbf16>
    %cst_12 = arith.constant dense<0.000000e+00> : vector<16x128xf32>
    %33 = tpu.matmul %32, %31, %cst_12 {dimension_numbers = #tpu.dot_dimension_numbers<[1], [0], [0], [1], [0, 0, 1, 1], [], []>} : vector<16x32xbf16>, vector<32x128xbf16>, vector<16x128xf32> -> vector<16x128xf32>
    %c0_13 = arith.constant 0 : index
    %c0_14 = arith.constant 0 : index
    %34 = vector.load %arg5[%c0_13, %c0_14] : memref<16x1xf32, #tpu.memory_space<vmem>>, vector<16x1xf32>
    %35 = vector.broadcast %34 : vector<16x1xf32> to vector<16x128xf32>
    %36 = arith.addf %33, %35 : vector<16x128xf32>
    %c0_15 = arith.constant 0 : index
    %c0_16 = arith.constant 0 : index
    %c0_17 = arith.constant 0 : index
    %37 = vector.load %arg6[%c0_15, %c0_16, %c0_17] : memref<1x16x128xf32, #tpu.memory_space<vmem>>, vector<1x16x128xf32>
    %38 = vector.shape_cast %37 : vector<1x16x128xf32> to vector<16x128xf32>
    %39 = vector.shape_cast %36 : vector<16x128xf32> to vector<1x16x128xf32>
    tpu.vector_store %arg6[%c0_15, %c0_16, %c0_17], %39 {strides = array<i32>} : memref<1x16x128xf32, #tpu.memory_space<vmem>>, vector<1x16x128xf32>,
    return
  }
  func.func @transform_0(%arg0: i32) -> (i32, i32, i32) {
    %c0_i32 = arith.constant 0 : i32
    %c0_i32_0 = arith.constant 0 : i32
    %c0_i32_1 = arith.constant 0 : i32
    return %arg0, %c0_i32, %c0_i32_0 : i32, i32, i32
  }
  func.func @transform_1(%arg0: i32) -> (i32, i32) {
    %c0_i32 = arith.constant 0 : i32
    %c0_i32_0 = arith.constant 0 : i32
    %c0_i32_1 = arith.constant 0 : i32
    return %c0_i32, %c0_i32_0 : i32, i32
  }
  func.func @transform_2(%arg0: i32) -> (i32, i32) {
    %c0_i32 = arith.constant 0 : i32
    %c0_i32_0 = arith.constant 0 : i32
    %c0_i32_1 = arith.constant 0 : i32
    return %c0_i32, %c0_i32_0 : i32, i32
  }
  func.func @transform_3(%arg0: i32) -> (i32, i32) {
    %c0_i32 = arith.constant 0 : i32
    %c0_i32_0 = arith.constant 0 : i32
    %c0_i32_1 = arith.constant 0 : i32
    return %c0_i32, %c0_i32_0 : i32, i32
  }
  func.func @transform_4(%arg0: i32) -> (i32, i32) {
    %c0_i32 = arith.constant 0 : i32
    %c0_i32_0 = arith.constant 0 : i32
    %c0_i32_1 = arith.constant 0 : i32
    return %c0_i32, %c0_i32_0 : i32, i32
  }
  func.func @transform_5(%arg0: i32) -> (i32, i32, i32) {
    %c0_i32 = arith.constant 0 : i32
    %c0_i32_0 = arith.constant 0 : i32
    %c0_i32_1 = arith.constant 0 : i32
    return %arg0, %c0_i32, %c0_i32_0 : i32, i32, i32
  }
}

</mosaic_0001>

<llo_original>
// kernel: tpu_custom_call.1
$region0: #{tpu_custom_call.1}
  #allocation0 [shape = 'u32[]', space=smem, size = 0x4, offset = 0x4, fixed_abs, tag = 'smem constant byte address 0x4 - core index']
  #allocation1 [shape = 'u32[144,128]{1,0:T(1,128)}', space=vmem, size = 0x12000, scoped, tag = 'internal scratch']
  %s0 = inlined_call_operand.vmem [shape: f32[2,16,128], index: 0, kind: input, shape index: {}]
  %s1 = inlined_call_operand.hbm [shape: bf16[16,48], index: 1, kind: input, shape index: {}]
  %s2 = inlined_call_operand.vmem [shape: f32[16,1], index: 2, kind: input, shape index: {}]
  %s3 = inlined_call_operand.vmem [shape: bf16[16,32], index: 3, kind: input, shape index: {}]
  %s4 = inlined_call_operand.vmem [shape: f32[16,1], index: 4, kind: input, shape index: {}]
  %s5 = inlined_call_operand.hbm [shape: f32[2,16,128], index: 5, kind: output, shape index: {}]
  %s6 = sld [smem:[#allocation0]]
  $region57: #{tpu_custom_call.1} parent=0
    _
  %s8 = ssub.s32 1, %s6
  %s9 = scalar_select 0, %s8, %s6
  $region1: #{tpu_custom_call.1} parent=0
    #allocation2 [shape = 'u8[4096]{0}', space=vmem, size = 0x1000, scoped, tag = 'input window, operand 1, single buffered']
    #allocation3 [shape = 's32[2]{0}', space=sflag, size = 0x8, scoped, tag = 'scoped memory for tpu_custom_call.1']
    #allocation4 [shape = 's32[2]{0}', space=sflag, size = 0x8, scoped, tag = 'scoped memory for tpu_custom_call.1']
    #allocation5 [shape = 'u8[16384]{0}', space=vmem, size = 0x4000, scoped, tag = 'output window, operand 0']
    %10 = vsyncpa [#allocation3], 0
    %11 = vsyncpa [#allocation4], 0
    %s12 = scalar_lea.sflag [#allocation4], 1
    %13 = vsyncpa %s12, 0
    loop: start=0, step=1, limit=4
    $region2: #{tpu_custom_call.1} parent=1 // loop_pre_header
      _
    $region3: #{tpu_custom_call.1} parent=1 // loop_header
      %s15 = sphi 0, %s19
      %p16 = scmp.ge.s32.totalorder %s15, 4
      %s25 = sphi 0, %s27
      %s28 = sphi 0, %s25
      %s29 = sphi 0, %s28
      %s45 = sphi 0, %s29
      %s49 = sphi 0, %s49
      %s51 = sphi 0, %s49
      %s52 = sphi 0, %s51
      %s66 = sphi 0, %s52
      %s70 = sphi 0, %s70
      %s72 = sphi 0, %s70
      %s73 = sphi 0, %s72
      %s87 = sphi 0, %s73
      %s91 = sphi 0, %s91
      %s93 = sphi 0, %s91
      %s94 = sphi 0, %s93
      %s108 = sphi 0, %s94
      %s112 = sphi 0, %s112
      %s114 = sphi 0, %s112
      %s115 = sphi 0, %s114
      %s129 = sphi 0, %s115
      %s135 = sphi 0, %s137
      %s138 = sphi 0, %s135
      %s139 = sphi 0, %s138
      %s155 = sphi 0, %s139
    $region4: #{tpu_custom_call.1} parent=1 // loop_header_branch
      %18 = sbr.rel (%p16) target = $region8
    $region5: #{tpu_custom_call.1} parent=1 // loop_body
      %s20 = ssub.s32 %s15, 1
      %s21 = ssub.s32 %s15, 2
      %s22 = sadd.s32 %s15, 1
      %s23 = ssub.s32 %s15, %s22
      %p24 = scmp.eq.s32.totalorder %s23, 0
      %s26 = sadd.s32 %s25, 1
      %s27 = scalar_select %p24, %s25, %s26
      %p30 = pneg %p24
      %p31 = scmp.eq.s32.totalorder %s15, 1
      %p32 = por %p30, %p31
      %p33 = scmp.ne.s32.totalorder %s25, %s28
      %p34 = scmp.eq.s32.totalorder %s15, 0
      %p35 = por %p33, %p34
      %p36 = scmp.ne.s32.totalorder %s25, %s28
      %p37 = scmp.eq.s32.totalorder %s20, 1
      %p38 = por %p36, %p37
      %p39 = scmp.ne.s32.totalorder %s28, %s29
      %p40 = scmp.eq.s32.totalorder %s20, 0
      %p41 = por %p39, %p40
      %p42 = scmp.ne.s32.totalorder %s28, %s29
      %p43 = scmp.eq.s32.totalorder %s21, 1
      %p44 = por %p42, %p43
      %p46 = scmp.ne.s32.totalorder %s29, %s45
      %p47 = scmp.eq.s32.totalorder %s21, 0
      %p48 = por %p46, %p47
      %s50 = sadd.s32 %s49, 1
      %p53 = scmp.eq.s32.totalorder %s15, 1
      %p54 = scmp.ne.s32.totalorder %s49, %s51
      %p55 = scmp.eq.s32.totalorder %s15, 0
      %p56 = por %p54, %p55
      %p57 = scmp.ne.s32.totalorder %s49, %s51
      %p58 = scmp.eq.s32.totalorder %s20, 1
      %p59 = por %p57, %p58
      %p60 = scmp.ne.s32.totalorder %s51, %s52
      %p61 = scmp.eq.s32.totalorder %s20, 0
      %p62 = por %p60, %p61
      %p63 = scmp.ne.s32.totalorder %s51, %s52
      %p64 = scmp.eq.s32.totalorder %s21, 1
      %p65 = por %p63, %p64
      %p67 = scmp.ne.s32.totalorder %s52, %s66
      %p68 = scmp.eq.s32.totalorder %s21, 0
      %p69 = por %p67, %p68
      %s71 = sadd.s32 %s70, 1
      %p74 = scmp.eq.s32.totalorder %s15, 1
      %p75 = scmp.ne.s32.totalorder %s70, %s72
      %p76 = scmp.eq.s32.totalorder %s15, 0
      %p77 = por %p75, %p76
      %p78 = scmp.ne.s32.totalorder %s70, %s72
      %p79 = scmp.eq.s32.totalorder %s20, 1
      %p80 = por %p78, %p79
      %p81 = scmp.ne.s32.totalorder %s72, %s73
      %p82 = scmp.eq.s32.totalorder %s20, 0
      %p83 = por %p81, %p82
      %p84 = scmp.ne.s32.totalorder %s72, %s73
      %p85 = scmp.eq.s32.totalorder %s21, 1
      %p86 = por %p84, %p85
      %p88 = scmp.ne.s32.totalorder %s73, %s87
      %p89 = scmp.eq.s32.totalorder %s21, 0
      %p90 = por %p88, %p89
      %s92 = sadd.s32 %s91, 1
      %p95 = scmp.eq.s32.totalorder %s15, 1
      %p96 = scmp.ne.s32.totalorder %s91, %s93
      %p97 = scmp.eq.s32.totalorder %s15, 0
      %p98 = por %p96, %p97
      %p99 = scmp.ne.s32.totalorder %s91, %s93
      %p100 = scmp.eq.s32.totalorder %s20, 1
      %p101 = por %p99, %p100
      %p102 = scmp.ne.s32.totalorder %s93, %s94
      %p103 = scmp.eq.s32.totalorder %s20, 0
      %p104 = por %p102, %p103
      %p105 = scmp.ne.s32.totalorder %s93, %s94
      %p106 = scmp.eq.s32.totalorder %s21, 1
      %p107 = por %p105, %p106
      %p109 = scmp.ne.s32.totalorder %s94, %s108
      %p110 = scmp.eq.s32.totalorder %s21, 0
      %p111 = por %p109, %p110
      %s113 = sadd.s32 %s112, 1
      %p116 = scmp.eq.s32.totalorder %s15, 1
      %p117 = scmp.ne.s32.totalorder %s112, %s114
      %p118 = scmp.eq.s32.totalorder %s15, 0
      %p119 = por %p117, %p118
      %p120 = scmp.ne.s32.totalorder %s112, %s114
      %p121 = scmp.eq.s32.totalorder %s20, 1
      %p122 = por %p120, %p121
      %p123 = scmp.ne.s32.totalorder %s114, %s115
      %p124 = scmp.eq.s32.totalorder %s20, 0
      %p125 = por %p123, %p124
      %p126 = scmp.ne.s32.totalorder %s114, %s115
      %p127 = scmp.eq.s32.totalorder %s21, 1
      %p128 = por %p126, %p127
      %p130 = scmp.ne.s32.totalorder %s115, %s129
      %p131 = scmp.eq.s32.totalorder %s21, 0
      %p132 = por %p130, %p131
      %s133 = ssub.s32 %s15, %s22
      %p134 = scmp.eq.s32.totalorder %s133, 0
      %s136 = sadd.s32 %s135, 1
      %s137 = scalar_select %p134, %s135, %s136
      %p140 = pneg %p134
      %p141 = scmp.eq.s32.totalorder %s15, 1
      %p142 = por %p140, %p141
      %p143 = scmp.ne.s32.totalorder %s135, %s138
      %p144 = scmp.eq.s32.totalorder %s15, 0
      %p145 = por %p143, %p144
      %p146 = scmp.ne.s32.totalorder %s135, %s138
      %p147 = scmp.eq.s32.totalorder %s20, 1
      %p148 = por %p146, %p147
      %p149 = scmp.ne.s32.totalorder %s138, %s139
      %p150 = scmp.eq.s32.totalorder %s20, 0
      %p151 = por %p149, %p150
      %p152 = scmp.ne.s32.totalorder %s138, %s139
      %p153 = scmp.eq.s32.totalorder %s21, 1
      %p154 = por %p152, %p153
      %p156 = scmp.ne.s32.totalorder %s139, %s155
      %p157 = scmp.eq.s32.totalorder %s21, 0
      %p158 = por %p156, %p157
      %p159 = scmp.le.s32.totalorder 1, %s15
      %p160 = scmp.lt.s32.totalorder %s15, 3
      %p161 = pnand %p159, %p160
      %p162 = pneg %p161
      // Predicated region
      $region9: #{tpu_custom_call.1} parent=5 // pred_check
        _
      $region10: #{tpu_custom_call.1} parent=5 // pred_check_branch
        %164 = sbr.rel (%p161) target = $region12
      $region11: #{tpu_custom_call.1} parent=5 // pred_region
        %s165 = ssub.s32 %s15, 1
        // Predicated region
        $region13: #{tpu_custom_call.1} parent=11 // pred_check
          %p166 = pneg %p62
        $region14: #{tpu_custom_call.1} parent=11 // pred_check_branch
          %168 = sbr.rel (%p166) target = $region16
        $region15: #{tpu_custom_call.1} parent=11 // pred_region
          %s170 = ssub.s32 128, 128
          %171 = vsyncadd [#allocation3], %s170
          %s172 = sshll.u32 [#allocation2], 4
          %s173 = int_to_ptr.vmem [resolvable:$true] %s172
          %178 = dma.hbm_to_vmem [thread:$0]  %s1, 128, %s173, [#allocation3], 64, 64, 4
        $region16: #{tpu_custom_call.1} parent=11 // pred_fallthru
          _
        // Predicated region
        $region17: #{tpu_custom_call.1} parent=11 // pred_check
          %p179 = pneg %p83
        $region18: #{tpu_custom_call.1} parent=11 // pred_check_branch
          %181 = sbr.rel (%p179) target = $region20
        $region19: #{tpu_custom_call.1} parent=11 // pred_region
          _
        $region20: #{tpu_custom_call.1} parent=11 // pred_fallthru
          _
        // Predicated region
        $region21: #{tpu_custom_call.1} parent=11 // pred_check
          %p182 = pneg %p104
        $region22: #{tpu_custom_call.1} parent=11 // pred_check_branch
          %184 = sbr.rel (%p182) target = $region24
        $region23: #{tpu_custom_call.1} parent=11 // pred_region
          _
        $region24: #{tpu_custom_call.1} parent=11 // pred_fallthru
          _
        // Predicated region
        $region25: #{tpu_custom_call.1} parent=11 // pred_check
          %p185 = pneg %p125
        $region26: #{tpu_custom_call.1} parent=11 // pred_check_branch
          %187 = sbr.rel (%p185) target = $region28
        $region27: #{tpu_custom_call.1} parent=11 // pred_region
          _
        $region28: #{tpu_custom_call.1} parent=11 // pred_fallthru
          _
      $region12: #{tpu_custom_call.1} parent=5 // pred_fallthru
        _
      %p188 = scmp.lt.s32.totalorder %s15, 2
      // Predicated region
      $region29: #{tpu_custom_call.1} parent=5 // pred_check
        %p189 = pneg %p188
      $region30: #{tpu_custom_call.1} parent=5 // pred_check_branch
        %191 = sbr.rel (%p189) target = $region32
      $region31: #{tpu_custom_call.1} parent=5 // pred_region
        // Predicated region
        $region33: #{tpu_custom_call.1} parent=31 // pred_check
          %p192 = pneg %p35
        $region34: #{tpu_custom_call.1} parent=31 // pred_check_branch
          %194 = sbr.rel (%p192) target = $region36
        $region35: #{tpu_custom_call.1} parent=31 // pred_region
          %p195 = scmp.lt.s32.totalorder %s15, 1
          %s196 = scalar_select %p195, %s15, 1
          %s197 = smul.addr %s196, 2
          %s198 = smul.addr %s197, 8
          %s199 = scalar_lea.vmem %s0, %s198
        $region36: #{tpu_custom_call.1} parent=31 // pred_fallthru
          _
      $region32: #{tpu_custom_call.1} parent=5 // pred_fallthru
        _
      %p200 = scmp.le.s32.totalorder 1, %s15
      %p201 = scmp.lt.s32.totalorder %s15, 3
      %p202 = pnand %p200, %p201
      %p203 = pneg %p202
      // Predicated region
      $region37: #{tpu_custom_call.1} parent=5 // pred_check
        _
      $region38: #{tpu_custom_call.1} parent=5 // pred_check_branch
        %205 = sbr.rel (%p202) target = $region40
      $region39: #{tpu_custom_call.1} parent=5 // pred_region
        %s206 = ssub.s32 %s15, 1
        // Predicated region
        $region41: #{tpu_custom_call.1} parent=39 // pred_check
          %p207 = pneg %p62
        $region42: #{tpu_custom_call.1} parent=39 // pred_check_branch
          %209 = sbr.rel (%p207) target = $region44
        $region43: #{tpu_custom_call.1} parent=39 // pred_region
          %210 = dma.done [#allocation3], 128
        $region44: #{tpu_custom_call.1} parent=39 // pred_fallthru
          _
        %p211 = scmp.lt.s32.totalorder %s20, 1
        %s212 = scalar_select %p211, %s20, 1
        %s213 = smul.addr %s212, 2
        %s214 = smul.addr %s213, 8
        %s215 = scalar_lea.vmem %s0, %s214
        %p216 = pneg %p41
        %p217 = pneg %p38
        %p218 = pneg %p62
        %p219 = pneg %p59
        %p220 = pneg %p83
        %p221 = pneg %p80
        %p222 = pneg %p104
        %p223 = pneg %p101
        %p224 = pneg %p125
        %p225 = pneg %p122
        %p226 = pneg %p151
        %p227 = pneg %p148
        %s228 = sand.u32 %s138, 1
        %s229 = scalar_lea.sflag [#allocation4], %s228
        %s230 = sand.u32 %s138, 1
        %s231 = smul.addr %s230, 16
        %s232 = scalar_lea.vmem [#allocation5], %s231
        %p233 = scmp.lt.s32.totalorder %s20, 1
        %s234 = scalar_select %p233, %s20, 1
        %s235 = smul.addr %s234, 2
        %s236 = smul.addr %s235, 8
        %s237 = scalar_lea.vmem %s0, %s236
        %v239 = vld [vmem:[%s237] sm:$0xff]
        %v240 = vld [vmem:[%s237 + $0x8] sm:$0xff]
        %vm241 = vcmp.ge.f32.partialorder %v239, 0.0
        %vm242 = vcmp.ge.f32.partialorder %v240, 0.0
        %v243 = vmul.f32 %v239, 0.2
        %v244 = vmul.f32 %v240, 0.2
        %v245 = vsel %vm241, %v239, %v243
        %v246 = vsel %vm242, %v240, %v244
        %v247 = vpack.c.bf16 %v246, %v245
        %v248 = vpack.c.bf16 %v240, %v239
        %250 = vset.pattern.permute.xlu0 0
        %251 = vperm.xlu0 %250, %v247
        %v252 = vpop.permute.xlu0 %251
        %254 = vrot.lane.b32.xlu0 %v247, 3
        %v255 = vpop.permute.xlu0 %254
        %vm256 = vcmask 23552
        %v258 = vsel %vm256, %v252, %v255
        %260 = vset.pattern.permute.xlu0 127
        %261 = vperm.xlu0 %260, %v247
        %v262 = vpop.permute.xlu0 %261
        %263 = vrot.lane.b32.xlu0 %v247, 125
        %v264 = vpop.permute.xlu0 %263
        %vm265 = vcmask 1022976
        %v267 = vsel %vm265, %v264, %v262
        %v269 = vld [vmem:[#allocation2] sm:$0xf]
        %v270 = vld [vmem:[#allocation2 + $0x4] sm:$0xf]
        %v271 = vld [vmem:[%s2] sm:$0xff]
        %v272 = vld [vmem:[%s2 + $0x8] sm:$0xff]
        %274 = vset.pattern.permute.xlu0 0
        %275 = vperm.xlu0 %274, %v271
        %v276 = vpop.permute.xlu0 %275
        %279 = vset.pattern.permute.xlu0 0
        %280 = vperm.xlu0 %279, %v272
        %v281 = vpop.permute.xlu0 %280
        %v285 = vunpack.c.l.b16 %v269
        %v286 = vunpack.c.l.b16 %v270
        %v287 = vpack.c.b16 %v286, %v285
        %vm288 = vcmask 392192
        %v290 = vsel %vm288, %v287, 0
        %292 = vmatprep.subr.bf16.mxu0 0
        %293 = vmatpush1.bf16.msra.mxu0 %v258
        %294 = vmatprep.subr.bf16.mxu0 0
        %295 = vmatpush1.bf16.msra.mxu0 %v247
        %296 = vmatprep.subr.bf16.mxu0 0
        %297 = vmatpush1.bf16.msra.mxu0 %v267
        %298 = vmatprep.subr.bf16.mxu0 0
        %299 = vmatpush1.bf16.msra.mxu0 0
        %300 = vmatprep.subr.bf16.mxu0 0
        %301 = vmatpush1.bf16.msra.mxu0 0
        %302 = vmatprep.subr.bf16.mxu0 0
        %303 = vmatpush1.bf16.msra.mxu0 0
        %304 = vmatprep.subr.bf16.mxu0 0
        %305 = vmatpush1.bf16.msra.mxu0 0
        %306 = vmatprep.subr.bf16.mxu0 0
        %307 = vmatpush1.bf16.msra.mxu0 0
        %308 = vmatprep.subr.bf16.mxu0 0
        %309 = vmatpush1.bf16.msra.mxu0 0
        %310 = vmatprep.subr.bf16.mxu0 0
        %311 = vmatpush1.bf16.msra.mxu0 0
        %312 = vmatprep.subr.bf16.mxu0 0
        %313 = vmatpush1.bf16.msra.mxu0 0
        %314 = vmatprep.subr.bf16.mxu0 0
        %315 = vmatpush1.bf16.msra.mxu0 0
        %316 = vmatprep.subr.bf16.mxu0 0
        %317 = vmatpush1.bf16.msra.mxu0 0
        %318 = vmatprep.subr.bf16.mxu0 0
        %319 = vmatpush1.bf16.msra.mxu0 0
        %320 = vmatprep.subr.bf16.mxu0 0
        %321 = vmatpush1.bf16.msra.mxu0 0
        %322 = vmatprep.subr.bf16.mxu0 0
        %323 = vmatpush1.bf16.msra.mxu0 0
        %324 = vmatprep.mubr.bf16.mxu0 0
        %325 = vmatmul.mubr.bf16.gmra.mrb[0].mxu0 %v290
        %v326 = vpop.f32.mrb[0].mxu0
        %v327 = vadd.f32 %v276, %v326
        %v328 = vpop.f32.mrb[0].mxu0
        %v329 = vpop.f32.mrb[0].mxu0
        %v330 = vadd.f32 %v281, %v329
        %v331 = vpop.f32.mrb[0].mxu0
        %332 = vdwg.mxu0
        %vm333 = vcmp.ge.f32.partialorder %v327, 0.0
        %vm334 = vcmp.ge.f32.partialorder %v330, 0.0
        %v335 = vmul.f32 %v327, 0.2
        %v336 = vmul.f32 %v330, 0.2
        %v337 = vsel %vm333, %v327, %v335
        %v338 = vsel %vm334, %v330, %v336
        %v339 = vpack.c.bf16 %v338, %v337
        %v340 = vld [vmem:[%s3] sm:$0xf]
        %v341 = vld [vmem:[%s3 + $0x4] sm:$0xf]
        %v342 = vld [vmem:[%s4] sm:$0xff]
        %v343 = vld [vmem:[%s4 + $0x8] sm:$0xff]
        %345 = vset.pattern.permute.xlu0 0
        %346 = vperm.xlu0 %345, %v342
        %v347 = vpop.permute.xlu0 %346
        %350 = vset.pattern.permute.xlu0 0
        %351 = vperm.xlu0 %350, %v343
        %v352 = vpop.permute.xlu0 %351
        %v356 = vunpack.c.l.b16 %v340
        %v357 = vunpack.c.l.b16 %v341
        %v358 = vpack.c.b16 %v357, %v356
        %vm359 = vcmask 261120
        %v361 = vsel %vm359, %v358, 0
        %363 = vmatprep.subr.bf16.mxu0 0
        %364 = vmatpush1.bf16.msra.mxu0 %v339
        %365 = vmatprep.subr.bf16.mxu0 0
        %366 = vmatpush1.bf16.msra.mxu0 %v248
        %367 = vmatprep.subr.bf16.mxu0 0
        %368 = vmatpush1.bf16.msra.mxu0 0
        %369 = vmatprep.subr.bf16.mxu0 0
        %370 = vmatpush1.bf16.msra.mxu0 0
        %371 = vmatprep.subr.bf16.mxu0 0
        %372 = vmatpush1.bf16.msra.mxu0 0
        %373 = vmatprep.subr.bf16.mxu0 0
        %374 = vmatpush1.bf16.msra.mxu0 0
        %375 = vmatprep.subr.bf16.mxu0 0
        %376 = vmatpush1.bf16.msra.mxu0 0
        %377 = vmatprep.subr.bf16.mxu0 0
        %378 = vmatpush1.bf16.msra.mxu0 0
        %379 = vmatprep.subr.bf16.mxu0 0
        %380 = vmatpush1.bf16.msra.mxu0 0
        %381 = vmatprep.subr.bf16.mxu0 0
        %382 = vmatpush1.bf16.msra.mxu0 0
        %383 = vmatprep.subr.bf16.mxu0 0
        %384 = vmatpush1.bf16.msra.mxu0 0
        %385 = vmatprep.subr.bf16.mxu0 0
        %386 = vmatpush1.bf16.msra.mxu0 0
        %387 = vmatprep.subr.bf16.mxu0 0
        %388 = vmatpush1.bf16.msra.mxu0 0
        %389 = vmatprep.subr.bf16.mxu0 0
        %390 = vmatpush1.bf16.msra.mxu0 0
        %391 = vmatprep.subr.bf16.mxu0 0
        %392 = vmatpush1.bf16.msra.mxu0 0
        %393 = vmatprep.subr.bf16.mxu0 0
        %394 = vmatpush1.bf16.msra.mxu0 0
        %395 = vmatprep.mubr.bf16.mxu0 0
        %396 = vmatmul.mubr.bf16.gmra.mrb[0].mxu0 %v361
        %v397 = vpop.f32.mrb[0].mxu0
        %v398 = vadd.f32 %v347, %v397
        %v399 = vpop.f32.mrb[0].mxu0
        %v400 = vpop.f32.mrb[0].mxu0
        %v401 = vadd.f32 %v352, %v400
        %v402 = vpop.f32.mrb[0].mxu0
        %403 = vdwg.mxu0
        %404 = vst [vmem:[%s232] sm:$0xff] %v398
        %405 = vst [vmem:[%s232 + $0x8] sm:$0xff] %v401
        %s406 = sand.u32 %s138, 1
        %s407 = scalar_lea.sflag [#allocation4], %s406
        %s408 = sand.u32 %s138, 1
        %s409 = smul.addr %s408, 16
        %s410 = scalar_lea.vmem [#allocation5], %s409
        // Predicated region
        $region45: #{tpu_custom_call.1} parent=39 // pred_check
          %p411 = pneg %p148
        $region46: #{tpu_custom_call.1} parent=39 // pred_check_branch
          %413 = sbr.rel (%p411) target = $region48
        $region47: #{tpu_custom_call.1} parent=39 // pred_region
          %s415 = ssub.s32 256, 256
          %416 = vsyncadd %s407, %s415
          %s417 = smul.addr %s20, 2
          %s418 = smul.addr %s417, 128
          %s419 = scalar_lea.hbm %s5, %s418
          %s420 = sshll.u32 %s410, 4
          %s421 = int_to_ptr.vmem [resolvable:$true] %s420
          %426 = dma.vmem_to_hbm [thread:$0]  %s421, 256, %s419, %s407, 128, 128, 8
        $region48: #{tpu_custom_call.1} parent=39 // pred_fallthru
          _
      $region40: #{tpu_custom_call.1} parent=5 // pred_fallthru
        _
      %p427 = scmp.le.s32.totalorder 2, %s15
      // Predicated region
      $region49: #{tpu_custom_call.1} parent=5 // pred_check
        %p428 = pneg %p427
      $region50: #{tpu_custom_call.1} parent=5 // pred_check_branch
        %430 = sbr.rel (%p428) target = $region52
      $region51: #{tpu_custom_call.1} parent=5 // pred_region
        %s431 = ssub.s32 %s15, 2
        // Predicated region
        $region53: #{tpu_custom_call.1} parent=51 // pred_check
          %p432 = pneg %p154
        $region54: #{tpu_custom_call.1} parent=51 // pred_check_branch
          %434 = sbr.rel (%p432) target = $region56
        $region55: #{tpu_custom_call.1} parent=51 // pred_region
          %s435 = sand.u32 %s139, 1
          %s436 = scalar_lea.sflag [#allocation4], %s435
          %s437 = sand.u32 %s139, 1
          %s438 = smul.addr %s437, 16
          %s439 = scalar_lea.vmem [#allocation5], %s438
          %440 = dma.done %s436, 256
        $region56: #{tpu_custom_call.1} parent=51 // pred_fallthru
          _
      $region52: #{tpu_custom_call.1} parent=5 // pred_fallthru
        _
    $region6: #{tpu_custom_call.1} parent=1 // loop_footer
      %s19 = sadd.s32 1, %s15
    $region7: #{tpu_custom_call.1} parent=1 // loop_footer_branch
      %14 = sbr.rel target = $region3
    $region8: #{tpu_custom_call.1} parent=1 // loop_exit
      _
    %441 = vsyncpa [#allocation3], 1
    %s442 = scalar_lea.sflag [#allocation3], 1
    %443 = vsyncpa %s442, 1
    %444 = vsyncpa [#allocation4], 1
    %s445 = scalar_lea.sflag [#allocation4], 1
    %446 = vsyncpa %s445, 1

</llo_original>
